<compile_context>
chip_gen: v5e
topology: v5e:2x2
jax: 0.10.0
libtpu: 0.0.40
codegen_flags: <defaults>
</compile_context>

<pallas_src>
import math

import jax
import jax.numpy as jnp
from jax.experimental import pallas as pl
from jax.experimental.pallas import tpu as pltpu


def _bias_kernel(x_ref, b_ref, o_ref):
    # Pure VPU elementwise add; the (1, tc) bias row broadcasts over the (tn, tc) tile.
    o_ref[...] = x_ref[...] + b_ref[...]


def _vmem_limit_bytes() -> int:
    """Scoped-VMEM ceiling to request, sized per TPU generation."""
    cap = None
    try:
        cap = getattr(pltpu.get_tpu_info(), "vmem_capacity_bytes", None)
    except Exception:
        cap = None
    if not cap or cap <= 0:
        cap = 64 << 20  # conservative default (v7x-sized physical VMEM)
    # Leave headroom for compiler internals; never ask for more than 96 MiB.
    return min(int(cap * 0.7), 96 << 20)


def _lane_dense_factor(n: int, d: int) -> int:
    """Fold k rows into the lane dim when d < 128 so output stores are unmasked."""
    if d >= 128 or n <= 0:
        return 1
    k = math.lcm(d, 128) // d  # smallest k with (k*d) % 128 == 0
    if n % k != 0:
        return 1
    # Grow towards >= 1024 lanes while n stays divisible (bigger unmasked stores).
    while (2 * k * d) <= 1024 and n % (2 * k) == 0:
        k *= 2
    return k


def _select_col_tile(d: int) -> int:
    if d <= 2048:
        return d  # one full-width block
    for tc in (2048, 1024, 512, 256, 128):
        if d % tc == 0:
            return tc
    return d  # d not a multiple of 128: keep full width


def _select_row_tile(n: int, tc: int, itemsize: int, tile_budget: int) -> int:
    tn = max(tile_budget // max(tc * itemsize, 1), 8)
    tn = min(tn, 2048, n)  # 512-2048 rows is the measured HBM-roofline plateau
    if tn >= n:
        return n  # full-extent block (exempt from the (8,128) constraint)
    return max((tn // 8) * 8, 8)


def bias_forward(x: jax.Array, bias: jax.Array, *, row_tile: int | None = None) -> jax.Array:
    """Compute x + bias[None, :] with a tiled, HBM-roofline-friendly Pallas TPU kernel.

    x: (n, d) array; bias: (d,) array (cast to x.dtype).
    """
    n, d = x.shape
    assert bias.shape == (d,)

    bias = bias.astype(x.dtype)  # avoid mixed-dtype promotion inside the kernel

    # Lane-dense layout for narrow feature dims (no extra compute, just reshape/tile).
    k = _lane_dense_factor(n, d)
    if k > 1:
        x_eff = x.reshape(n // k, k * d)
        b_eff = jnp.tile(bias, k).reshape(1, k * d)
    else:
        x_eff = x
        b_eff = bias.reshape(1, d)
    n_eff, d_eff = x_eff.shape

    vmem_limit = _vmem_limit_bytes()
    # x tile and out tile are each double-buffered (+ bias block) -> budget ~1/5 of limit.
    tile_budget = vmem_limit // 5
    itemsize = jnp.dtype(x.dtype).itemsize

    tc = _select_col_tile(d_eff)
    if row_tile is not None:
        tn = min(row_tile, n_eff)
        if tn < n_eff:
            tn = max((tn // 8) * 8, 8)
    else:
        tn = _select_row_tile(n_eff, tc, itemsize, tile_budget)

    # Pad rows so the grid covers n_eff exactly (remainder sliced off afterwards).
    n_blocks = pl.cdiv(n_eff, tn)
    n_pad = n_blocks * tn
    if n_pad != n_eff:
        x_eff = jnp.pad(x_eff, ((0, n_pad - n_eff), (0, 0)))

    grid = (n_blocks, d_eff // tc)

    out = pl.pallas_call(
        _bias_kernel,
        out_shape=jax.ShapeDtypeStruct((n_pad, d_eff), x.dtype),
        grid_spec=pltpu.PrefetchScalarGridSpec(
            num_scalar_prefetch=0,
            grid=grid,
            in_specs=[
                pl.BlockSpec((tn, tc), lambda i, j: (i, j)),  # row/col tile of x
                pl.BlockSpec((1, tc), lambda i, j: (0, j)),   # matching bias slice
            ],
            out_specs=pl.BlockSpec((tn, tc), lambda i, j: (i, j)),
        ),
        compiler_params=pltpu.CompilerParams(
            dimension_semantics=("parallel", "parallel"),
            vmem_limit_bytes=vmem_limit,
        ),
    )(x_eff, b_eff)

    if n_pad != n_eff:
        out = out[:n_eff]
    if k > 1:
        out = out.reshape(n, d)
    return out


class BiasPallas:
    """Minimal JAX analogue of the PyTorch Bias module (zero-initialized bias)."""

    def __init__(self, dim: int):
        # reset_parameters(): nn.init.zeros_(self.bias)
        self.bias = jnp.zeros((dim,), dtype=jnp.float32)

    def __call__(self, x: jax.Array) -> jax.Array:
        return bias_forward(x, self.bias)


if __name__ == "__main__":
    key = jax.random.PRNGKey(0)

    # Small shape consistent with forward(x: (n, d)); d < 128 exercises the lane-dense path.
    n, d = 8, 32
    x = jax.random.normal(key, (n, d), dtype=jnp.float32)

    module = BiasPallas(dim=d)
    # Non-trivial deterministic bias to actually exercise the broadcast add.
    module.bias = jnp.arange(d, dtype=jnp.float32) * 0.01

    out = jax.block_until_ready(module(x))
    ref = x + module.bias[None, :]
    assert out.shape == (n, d) and out.dtype == x.dtype
    assert jnp.allclose(out, ref, atol=1e-6, rtol=1e-6)

    # Second small case: non-divisible rows + forced row tiling exercises padding & 2-D grid.
    n2, d2 = 300, 256
    x2 = jax.random.normal(jax.random.PRNGKey(1), (n2, d2), dtype=jnp.float32)
    b2 = jnp.linspace(-1.0, 1.0, d2, dtype=jnp.float32)
    out2 = jax.block_until_ready(bias_forward(x2, b2, row_tile=64))
    ref2 = x2 + b2[None, :]
    assert jnp.allclose(out2, ref2, atol=1e-6, rtol=1e-6)

    print("KERNEL_OK")
</pallas_src>

<mosaic_0001>
module attributes {stable_mosaic.version = 11 : i64} {
  func.func @_bias_kernel(%arg0: i32, %arg1: i32, %arg2: memref<1x256xf32, #tpu.memory_space<vmem>>, %arg3: memref<1x256xf32, #tpu.memory_space<vmem>>, %arg4: memref<1x256xf32, #tpu.memory_space<vmem>>) attributes {dimension_semantics = [#tpu.dimension_semantics<parallel>, #tpu.dimension_semantics<parallel>], iteration_bounds = array<i64: 1, 1>, scalar_prefetch = 0 : i64, scratch_operands = 0 : i64, tpu.core_type = #tpu.core_type<tc>, window_params = [{transform_indices = @transform_0, window_bounds = array<i64: 1, 256>}, {transform_indices = @transform_1, window_bounds = array<i64: 1, 256>}, {transform_indices = @transform_2, window_bounds = array<i64: 1, 256>}]} {
    %c0 = arith.constant 0 : index
    %c0_0 = arith.constant 0 : index
    %0 = vector.load %arg2[%c0, %c0_0] : memref<1x256xf32, #tpu.memory_space<vmem>>, vector<1x256xf32>
    %c0_1 = arith.constant 0 : index
    %c0_2 = arith.constant 0 : index
    %1 = vector.load %arg3[%c0_1, %c0_2] : memref<1x256xf32, #tpu.memory_space<vmem>>, vector<1x256xf32>
    %2 = arith.addf %0, %1 : vector<1x256xf32>
    %c0_3 = arith.constant 0 : index
    %c0_4 = arith.constant 0 : index
    %3 = vector.load %arg4[%c0_3, %c0_4] : memref<1x256xf32, #tpu.memory_space<vmem>>, vector<1x256xf32>
    tpu.vector_store %arg4[%c0_3, %c0_4], %2 {strides = array<i32>} : memref<1x256xf32, #tpu.memory_space<vmem>>, vector<1x256xf32>,
    return
  }
  func.func @transform_0(%arg0: i32, %arg1: i32) -> (i32, i32) {
    %c0_i32 = arith.constant 0 : i32
    return %arg0, %arg1 : i32, i32
  }
  func.func @transform_1(%arg0: i32, %arg1: i32) -> (i32, i32) {
    %c0_i32 = arith.constant 0 : i32
    %c0_i32_0 = arith.constant 0 : i32
    return %c0_i32, %arg1 : i32, i32
  }
  func.func @transform_2(%arg0: i32, %arg1: i32) -> (i32, i32) {
    %c0_i32 = arith.constant 0 : i32
    return %arg0, %arg1 : i32, i32
  }
}

</mosaic_0001>

<llo_original>
// kernel: tpu_custom_call.1
$region0: #{tpu_custom_call.1}
  #allocation0 [shape = 'u32[]', space=smem, size = 0x4, offset = 0x4, fixed_abs, tag = 'smem constant byte address 0x4 - core index']
  #allocation1 [shape = 'u32[72,128]{1,0:T(1,128)}', space=vmem, size = 0x9000, scoped, tag = 'internal scratch']
  %s0 = inlined_call_operand.hbm [shape: f32[1,256], index: 0, kind: input, shape index: {}]
  %s1 = inlined_call_operand.hbm [shape: f32[1,256], index: 1, kind: input, shape index: {}]
  %s2 = inlined_call_operand.hbm [shape: f32[1,256], index: 2, kind: output, shape index: {}]
  %s3 = sld [smem:[#allocation0]]
  $region26: #{tpu_custom_call.1} parent=0
    _
  %s5 = ssub.s32 1, %s3
  %s6 = scalar_select 0, %s5, %s3
  $region1: #{tpu_custom_call.1} parent=0
    #allocation2 [shape = 'u8[1024]{0}', space=vmem, size = 0x400, scoped, tag = 'input window, operand 0, single buffered']
    #allocation3 [shape = 's32[1]{0}', space=sflag, size = 0x4, scoped, tag = 'scoped memory for tpu_custom_call.1']
    #allocation4 [shape = 's32[1]{0}', space=sflag, size = 0x4, scoped, tag = 'scoped memory for tpu_custom_call.1']
    #allocation5 [shape = 'u8[1024]{0}', space=vmem, size = 0x400, scoped, tag = 'input window, operand 1, single buffered']
    #allocation6 [shape = 's32[1]{0}', space=sflag, size = 0x4, scoped, tag = 'scoped memory for tpu_custom_call.1']
    #allocation7 [shape = 'u8[1024]{0}', space=vmem, size = 0x400, scoped, tag = 'output window, operand 0, single buffered']
    %7 = vsyncpa [#allocation3], 0
    %8 = vsyncpa [#allocation6], 0
    %9 = vsyncpa [#allocation4], 0
    // Predicated region
    $region2: #{tpu_custom_call.1} parent=1 // pred_check
      _
    $region3: #{tpu_custom_call.1} parent=1 // pred_check_branch
      %11 = sbr.rel (0) target = $region5
    $region4: #{tpu_custom_call.1} parent=1 // pred_region
      %13 = vsyncadd [#allocation3], 0
      %s15 = sshll.u32 %s0, 4
      %s16 = int_to_ptr.hbm [resolvable:$true] %s15
      %s17 = sshll.u32 [#allocation2], 4
      %s18 = int_to_ptr.vmem [resolvable:$true] %s17
      %20 = dma.hbm_to_vmem [thread:$0]  %s16, 32, %s18, [#allocation3]
    $region5: #{tpu_custom_call.1} parent=1 // pred_fallthru
      _
    // Predicated region
    $region6: #{tpu_custom_call.1} parent=1 // pred_check
      _
    $region7: #{tpu_custom_call.1} parent=1 // pred_check_branch
      %22 = sbr.rel (0) target = $region9
    $region8: #{tpu_custom_call.1} parent=1 // pred_region
      %24 = vsyncadd [#allocation6], 0
      %s26 = sshll.u32 %s1, 4
      %s27 = int_to_ptr.hbm [resolvable:$true] %s26
      %s28 = sshll.u32 [#allocation5], 4
      %s29 = int_to_ptr.vmem [resolvable:$true] %s28
      %31 = dma.hbm_to_vmem [thread:$0]  %s27, 32, %s29, [#allocation6]
    $region9: #{tpu_custom_call.1} parent=1 // pred_fallthru
      _
    // Predicated region
    $region10: #{tpu_custom_call.1} parent=1 // pred_check
      _
    $region11: #{tpu_custom_call.1} parent=1 // pred_check_branch
      %33 = sbr.rel (0) target = $region13
    $region12: #{tpu_custom_call.1} parent=1 // pred_region
      %35 = dma.done [#allocation3], 32
    $region13: #{tpu_custom_call.1} parent=1 // pred_fallthru
      _
    // Predicated region
    $region14: #{tpu_custom_call.1} parent=1 // pred_check
      _
    $region15: #{tpu_custom_call.1} parent=1 // pred_check_branch
      %37 = sbr.rel (0) target = $region17
    $region16: #{tpu_custom_call.1} parent=1 // pred_region
      %39 = dma.done [#allocation6], 32
    $region17: #{tpu_custom_call.1} parent=1 // pred_fallthru
      _
    %v40 = vld [vmem:[#allocation2] sm:$0x3]
    %v41 = vld [vmem:[#allocation5] sm:$0x3]
    %v42 = vadd.f32 %v40, %v41
    %v43 = vlaneseq
    %vm44 = vcmp.ge.s32.totalorder %v43, 0
    %vm45 = vcmp.lt.s32.totalorder %v43, 256
    %vm46 = vmand %vm44, %vm45
    %47 = vst.msk [vmem:[#allocation7] sm:$0x3] %vm46, %v42
    // Predicated region
    $region18: #{tpu_custom_call.1} parent=1 // pred_check
      _
    $region19: #{tpu_custom_call.1} parent=1 // pred_check_branch
      %49 = sbr.rel (0) target = $region21
    $region20: #{tpu_custom_call.1} parent=1 // pred_region
      %51 = vsyncadd [#allocation4], 0
      %s53 = sshll.u32 [#allocation7], 4
      %s54 = int_to_ptr.vmem [resolvable:$true] %s53
      %s55 = sshll.u32 %s2, 4
      %s56 = int_to_ptr.hbm [resolvable:$true] %s55
      %58 = dma.vmem_to_hbm [thread:$0]  %s54, 32, %s56, [#allocation4]
    $region21: #{tpu_custom_call.1} parent=1 // pred_fallthru
      _
    // Predicated region
    $region22: #{tpu_custom_call.1} parent=1 // pred_check
      _
    $region23: #{tpu_custom_call.1} parent=1 // pred_check_branch
      %60 = sbr.rel (0) target = $region25
    $region24: #{tpu_custom_call.1} parent=1 // pred_region
      %62 = dma.done [#allocation4], 32
    $region25: #{tpu_custom_call.1} parent=1 // pred_fallthru
      _
    %63 = vsyncpa [#allocation3], 1
    %64 = vsyncpa [#allocation6], 1
    %65 = vsyncpa [#allocation4], 1

</llo_original>
